<compile_context>
chip_gen: v6e
topology: v6e:2x2x1
jax: 0.10.0
libtpu: 0.0.40
codegen_flags: <defaults>
</compile_context>

<pallas_src>
import functools
import math

import jax
import jax.numpy as jnp
from jax.experimental import pallas as pl
from jax.experimental.pallas import tpu as pltpu


def _round_up(x, m):
    return ((x + m - 1) // m) * m


# -----------------------------------------------------------------------------
# Pallas kernel: one batch tile per grid step (TB rows), everything lane-dense.
# -----------------------------------------------------------------------------
def _attention_kernel(
    dec_ref,    # (TB, Hd)            bf16  decoder hidden state
    enc_ref,    # (TB, S_pad, He_pad) bf16  encoder outputs (zero padded)
    mask_ref,   # (TB, S_pad)         bf16  user mask (zero padded)
    wa_h_ref,   # (Hd, Ha_pad)        bf16  pre-transposed W_h slice (decoder part)
    wa_e_ref,   # (He_pad, Ha_pad)    bf16  pre-transposed W_h slice (encoder part)
    v_ref,      # (1, Ha_pad)         f32
    a_ref,      # (TB, S_pad)         f32   out: attention weights
    ctx_ref,    # (TB, 1, He_pad)     f32   out: context vector
    *,
    s_valid,    # static: number of real (unpadded) sequence positions
):
    TB, S, He = enc_ref.shape          # padded, static
    enc = enc_ref[...]                 # (TB, S, He) bf16

    # energy = tanh(W_h(cat([H, enc], -1))) == tanh(dec @ wa_h + enc @ wa_e)
    # bf16 x bf16 MXU pushes with f32 accumulation; the (TB*S, He) flatten is layout-free
    # because S is padded to a multiple of 128 in the wrapper.
    h_proj = jnp.dot(dec_ref[...], wa_h_ref[...],
                     preferred_element_type=jnp.float32)               # (TB, Ha)
    e_proj = jnp.dot(enc.reshape(TB * S, He), wa_e_ref[...],
                     preferred_element_type=jnp.float32)               # (TB*S, Ha)
    energy = jnp.tanh(e_proj.reshape(TB, S, -1) + h_proj[:, None, :])  # (TB, S, Ha) f32

    # scores[b, s] = v . energy[b, s, :]   (VPU mul + XLU lane reduce; v kept f32)
    scores = jnp.sum(energy * v_ref[...][None, :, :], axis=-1)         # (TB, S) f32

    # Structural-padding mask ONLY (positions s >= s_valid do not exist in the input).
    # The user-supplied inp_mask is applied AFTER the softmax, exactly as in PyTorch.
    if s_valid < S:
        pos = jax.lax.broadcasted_iota(jnp.int32, scores.shape, 1)
        scores = jnp.where(pos < s_valid, scores, -1e30)

    # softmax over S (f32), then mask, then 1e-10 renormalization (reference ordering).
    m = jnp.max(scores, axis=-1, keepdims=True)
    e = jnp.exp(scores - m)
    a = e * pl.reciprocal(jnp.sum(e, axis=-1, keepdims=True), approx=True)        # EUP
    a = a * mask_ref[...].astype(jnp.float32)
    a = a * pl.reciprocal(jnp.sum(a, axis=-1, keepdims=True) + 1e-10, approx=True)
    a_ref[...] = a

    # context[b] = a[b, :] @ enc[b]  -- batched MXU contraction (off the VALU slot);
    # bf16 operands, f32 accumulation. Zero-padded S rows / He cols contribute nothing.
    ctx_ref[...] = jnp.einsum("bqs,bse->bqe",
                              a[:, None, :].astype(enc.dtype), enc,
                              preferred_element_type=jnp.float32)      # (TB, 1, He)


# -----------------------------------------------------------------------------
# One-time parameter packing (hoisted out of the per-call / per-decode-step path)
# -----------------------------------------------------------------------------
def prepack_attention_params(params, hidden_size, hidden_size1,
                             *, param_dtype=jnp.bfloat16):
    """Split + transpose + lane-pad W_h and v once.

    W_h (torch Linear layout): (Ha, Hd + He) with Ha == Hd == hidden_size, He == hidden_size1.
    Returns bf16 wa_h (Hd, Ha_pad), wa_e (He_pad, Ha_pad) and f32 v (1, Ha_pad);
    zero padding is mathematically inert (zero weight columns/rows).
    """
    Hd, He, Ha = hidden_size, hidden_size1, hidden_size
    W = jnp.asarray(params["W_h"])
    assert W.shape == (Ha, Hd + He)
    Ha_pad = _round_up(Ha, 128)
    He_pad = _round_up(He, 128)
    wa_h = jnp.zeros((Hd, Ha_pad), param_dtype).at[:, :Ha].set(
        W[:, :Hd].T.astype(param_dtype))
    wa_e = jnp.zeros((He_pad, Ha_pad), param_dtype).at[:He, :Ha].set(
        W[:, Hd:].T.astype(param_dtype))
    # v is tiny and used on the VPU against f32 energy -> keep f32 (avoids an upcast on v5e).
    v = jnp.zeros((1, Ha_pad), jnp.float32).at[0, :Ha].set(
        jnp.asarray(params["v"]).astype(jnp.float32))
    return {"wa_h": wa_h, "wa_e": wa_e, "v": v}


# -----------------------------------------------------------------------------
# Batch-tile heuristic: big enough to amortize per-step overhead, small enough that
# the double-buffered streams + f32 intermediates stay under v7x's 32 MiB scoped VMEM.
# -----------------------------------------------------------------------------
_VMEM_SOFT_BUDGET = 20 * 1024 * 1024


def _auto_block_b(B, S_pad, He_pad, Ha_pad, Hd):
    if B <= 8:
        return B

    def footprint(tb):
        bf16, f32 = 2, 4
        streamed = tb * (S_pad * He_pad * bf16 + Hd * bf16 + S_pad * bf16   # inputs
                         + S_pad * f32 + He_pad * f32)                      # outputs
        resident = 2 * ((Hd + He_pad) * Ha_pad * bf16 + Ha_pad * f32)       # params
        interm = 2 * tb * S_pad * Ha_pad * f32                              # e_proj/energy
        return 2 * streamed + resident + interm

    tb = min(32, max(8, (_round_up(B, 8) // 2) // 8 * 8))   # >=2 grid steps when B > 8
    while tb > 8 and footprint(tb) > _VMEM_SOFT_BUDGET:
        tb //= 2                                             # 32 -> 16 -> 8 (multiples of 8)
    return tb


def _pad_to(x, shape):
    pads = [(0, t - s) for s, t in zip(x.shape, shape)]
    if not any(p[1] for p in pads):
        return x
    return jnp.pad(x, pads)


# -----------------------------------------------------------------------------
# Wrapper (mirrors Attention.forward)
# -----------------------------------------------------------------------------
def attention_forward(packed, encoder_outputs, decoder_hidden, inp_mask,
                      *, block_b=None, interpret=False):
    """encoder_outputs (B,S,He) ; decoder_hidden (B,Hd) ; inp_mask (B,S)
    returns (a (B,1,S), context (B,1,He))."""
    wa_h, wa_e, v = packed["wa_h"], packed["wa_e"], packed["v"]
    B, S, He = encoder_outputs.shape
    Hd, Ha_pad = wa_h.shape
    He_pad = wa_e.shape[0]
    assert decoder_hidden.shape == (B, Hd)
    assert He <= He_pad

    S_pad = _round_up(S, 128)            # lane-dense `a` stores + S%8-safe in-kernel flatten
    if block_b is None:
        block_b = _auto_block_b(B, S_pad, He_pad, Ha_pad, Hd)
    B_pad = _round_up(B, block_b)

    # bf16 over HBM for the dominant streams; zero-pad to lane-dense shapes
    # (no-op when shapes are already aligned).
    enc = _pad_to(encoder_outputs.astype(jnp.bfloat16), (B_pad, S_pad, He_pad))
    dec = _pad_to(decoder_hidden.astype(jnp.bfloat16), (B_pad, Hd))
    mask = _pad_to(inp_mask.astype(jnp.bfloat16), (B_pad, S_pad))

    grid = (B_pad // block_b,)

    flops = (2 * B_pad * Hd * Ha_pad
             + 2 * B_pad * S_pad * He_pad * Ha_pad
             + 2 * B_pad * S_pad * Ha_pad
             + 2 * B_pad * S_pad * He_pad)
    transcendentals = B_pad * S_pad * (Ha_pad + 1)            # tanh + exp
    bytes_accessed = (2 * (B_pad * Hd + B_pad * S_pad * He_pad + B_pad * S_pad
                           + Hd * Ha_pad + He_pad * Ha_pad)   # bf16 in
                      + 4 * Ha_pad                            # f32 v
                      + 4 * (B_pad * S_pad + B_pad * He_pad)) # f32 out

    a_pad, ctx_pad = pl.pallas_call(
        functools.partial(_attention_kernel, s_valid=S),
        grid=grid,
        in_specs=[
            pl.BlockSpec((block_b, Hd), lambda i: (i, 0)),              # dec
            pl.BlockSpec((block_b, S_pad, He_pad), lambda i: (i, 0, 0)),# enc
            pl.BlockSpec((block_b, S_pad), lambda i: (i, 0)),           # mask
            pl.BlockSpec((Hd, Ha_pad), lambda i: (0, 0)),               # wa_h (resident)
            pl.BlockSpec((He_pad, Ha_pad), lambda i: (0, 0)),           # wa_e (resident)
            pl.BlockSpec((1, Ha_pad), lambda i: (0, 0)),                # v    (resident)
        ],
        out_specs=[
            pl.BlockSpec((block_b, S_pad), lambda i: (i, 0)),           # a
            pl.BlockSpec((block_b, 1, He_pad), lambda i: (i, 0, 0)),    # context
        ],
        out_shape=(
            jax.ShapeDtypeStruct((B_pad, S_pad), jnp.float32),
            jax.ShapeDtypeStruct((B_pad, 1, He_pad), jnp.float32),
        ),
        compiler_params=pltpu.CompilerParams(
            dimension_semantics=("parallel",),                # v7x: shard batch over 2 TCs
            vmem_limit_bytes=32 * 1024 * 1024,                # explicit, safe on v5e/v6e/v7x
        ),
        cost_estimate=pl.CostEstimate(
            flops=flops, transcendentals=transcendentals, bytes_accessed=bytes_accessed),
        interpret=interpret,
    )(dec, enc, mask, wa_h, wa_e, v)

    a = a_pad[:B, :S][:, None, :]        # (B, 1, S)
    ctx = ctx_pad[:B, :, :He]            # (B, 1, He)
    return a, ctx


# -----------------------------------------------------------------------------
# Pure-JAX f32 reference (mirrors the PyTorch forward 1:1)
# -----------------------------------------------------------------------------
def attention_reference(params, encoder_outputs, decoder_hidden, inp_mask):
    B, S, He = encoder_outputs.shape
    Hd = decoder_hidden.shape[-1]
    H = jnp.broadcast_to(decoder_hidden[:, None, :], (B, S, Hd))
    cat = jnp.concatenate([H, encoder_outputs], axis=-1)
    energy = jnp.tanh(cat @ params["W_h"].T)                 # (B, S, Ha)
    scores = jnp.einsum("bsh,h->bs", energy, params["v"])    # (B, S)
    a = jax.nn.softmax(scores, axis=-1) * inp_mask
    a = a / (a.sum(-1, keepdims=True) + 1e-10)
    context = jnp.einsum("bs,bse->be", a, encoder_outputs)
    return a[:, None, :], context[:, None, :]


# -----------------------------------------------------------------------------
# Deterministic parameter construction (shapes follow Attention.__init__)
# -----------------------------------------------------------------------------
def make_params(key, hidden_size, hidden_size1):
    k_w, k_v = jax.random.split(key)
    fan_out, fan_in = hidden_size, hidden_size + hidden_size1
    std = math.sqrt(2.0 / (fan_in + fan_out))                # xavier_normal_
    W = jax.random.normal(k_w, (fan_out, fan_in), jnp.float32) * std
    v = jax.random.normal(k_v, (hidden_size,), jnp.float32) * (1.0 / math.sqrt(hidden_size))
    return {"W_h": W, "v": v}


if __name__ == "__main__":
    B, S = 2, 8
    hidden_size, hidden_size1 = 32, 64   # Hd == Ha (decoder / attention dim), He (encoder dim)

    key = jax.random.PRNGKey(0)
    k_par, k_enc, k_dec = jax.random.split(key, 3)

    params = make_params(k_par, hidden_size, hidden_size1)
    encoder_outputs = jax.random.normal(k_enc, (B, S, hidden_size1), jnp.float32)
    decoder_hidden = jax.random.normal(k_dec, (B, hidden_size), jnp.float32)
    inp_mask = jnp.ones((B, S), jnp.float32).at[:, S - 2:].set(0.0)  # mask last 2 positions

    # One-time parameter packing (hoisted out of the per-step path).
    packed = prepack_attention_params(params, hidden_size, hidden_size1)

    fwd = jax.jit(attention_forward)
    a, ctx = fwd(packed, encoder_outputs, decoder_hidden, inp_mask)
    jax.block_until_ready((a, ctx))

    assert a.shape == (B, 1, S)
    assert ctx.shape == (B, 1, hidden_size1)

    # Tight check: run the f32 reference on the same bf16-rounded inputs the kernel sees
    # (isolates kernel numerics from the intentional bf16 HBM ingestion).
    q = lambda x: x.astype(jnp.bfloat16).astype(jnp.float32)
    params_q = {"W_h": q(params["W_h"]), "v": params["v"]}
    a_q, ctx_q = attention_reference(params_q, q(encoder_outputs), q(decoder_hidden), inp_mask)
    assert jnp.allclose(a, a_q, atol=1e-2, rtol=1e-2)
    assert jnp.allclose(ctx, ctx_q, atol=1e-2, rtol=1e-2)

    # End-to-end check against the exact f32 reference (looser: bf16 input quantization).
    a_ref, ctx_ref = attention_reference(params, encoder_outputs, decoder_hidden, inp_mask)
    assert jnp.allclose(a, a_ref, atol=5e-2, rtol=5e-2)
    assert jnp.allclose(ctx, ctx_ref, atol=5e-2, rtol=5e-2)

    print("KERNEL_OK")
</pallas_src>

<mosaic_0001>
module attributes {stable_mosaic.version = 11 : i64} {
  func.func @_attention_kernel(%arg0: i32, %arg1: memref<2x32xbf16, #tpu.memory_space<vmem>>, %arg2: memref<2x128x128xbf16, #tpu.memory_space<vmem>>, %arg3: memref<2x128xbf16, #tpu.memory_space<vmem>>, %arg4: memref<32x128xbf16, #tpu.memory_space<vmem>>, %arg5: memref<128x128xbf16, #tpu.memory_space<vmem>>, %arg6: memref<1x128xf32, #tpu.memory_space<vmem>>, %arg7: memref<2x128xf32, #tpu.memory_space<vmem>>, %arg8: memref<2x1x128xf32, #tpu.memory_space<vmem>>) attributes {dimension_semantics = [#tpu.dimension_semantics<parallel>], iteration_bounds = array<i64: 1>, scalar_prefetch = 0 : i64, scratch_operands = 0 : i64, tpu.core_type = #tpu.core_type<tc>, window_params = [{transform_indices = @transform_0, window_bounds = array<i64: 2, 32>}, {transform_indices = @transform_1, window_bounds = array<i64: 2, 128, 128>}, {transform_indices = @transform_2, window_bounds = array<i64: 2, 128>}, {pipeline_mode = #tpu.pipeline_mode<synchronous>, transform_indices = @transform_3, window_bounds = array<i64: 32, 128>}, {pipeline_mode = #tpu.pipeline_mode<synchronous>, transform_indices = @transform_4, window_bounds = array<i64: 128, 128>}, {pipeline_mode = #tpu.pipeline_mode<synchronous>, transform_indices = @transform_5, window_bounds = array<i64: 1, 128>}, {transform_indices = @transform_6, window_bounds = array<i64: 2, 128>}, {transform_indices = @transform_7, window_bounds = array<i64: 2, 1, 128>}]} {
    %c0 = arith.constant 0 : index
    %c0_0 = arith.constant 0 : index
    %c0_1 = arith.constant 0 : index
    %0 = vector.load %arg2[%c0, %c0_0, %c0_1] : memref<2x128x128xbf16, #tpu.memory_space<vmem>>, vector<2x128x128xbf16>
    %c0_2 = arith.constant 0 : index
    %c0_3 = arith.constant 0 : index
    %1 = vector.load %arg1[%c0_2, %c0_3] : memref<2x32xbf16, #tpu.memory_space<vmem>>, vector<2x32xbf16>
    %c0_4 = arith.constant 0 : index
    %c0_5 = arith.constant 0 : index
    %2 = vector.load %arg4[%c0_4, %c0_5] : memref<32x128xbf16, #tpu.memory_space<vmem>>, vector<32x128xbf16>
    %cst = arith.constant dense<0.000000e+00> : vector<2x128xf32>
    %3 = tpu.matmul %1, %2, %cst {dimension_numbers = #tpu.dot_dimension_numbers<[1], [0], [0], [1], [0, 0, 1, 1], [], []>} : vector<2x32xbf16>, vector<32x128xbf16>, vector<2x128xf32> -> vector<2x128xf32>
    %4 = vector.shape_cast %0 : vector<2x128x128xbf16> to vector<256x128xbf16>
    %c0_6 = arith.constant 0 : index
    %c0_7 = arith.constant 0 : index
    %5 = vector.load %arg5[%c0_6, %c0_7] : memref<128x128xbf16, #tpu.memory_space<vmem>>, vector<128x128xbf16>
    %cst_8 = arith.constant dense<0.000000e+00> : vector<256x128xf32>
    %6 = tpu.matmul %4, %5, %cst_8 {dimension_numbers = #tpu.dot_dimension_numbers<[1], [0], [0], [1], [0, 0, 1, 1], [], []>} : vector<256x128xbf16>, vector<128x128xbf16>, vector<256x128xf32> -> vector<256x128xf32>
    %7 = vector.shape_cast %6 : vector<256x128xf32> to vector<2x128x128xf32>
    %8 = vector.shape_cast %3 : vector<2x128xf32> to vector<2x1x128xf32>
    %9 = vector.broadcast %8 : vector<2x1x128xf32> to vector<2x128x128xf32>
    %10 = arith.addf %7, %9 : vector<2x128x128xf32>
    %11 = math.tanh %10 : vector<2x128x128xf32>
    %c0_9 = arith.constant 0 : index
    %c0_10 = arith.constant 0 : index
    %12 = vector.load %arg6[%c0_9, %c0_10] : memref<1x128xf32, #tpu.memory_space<vmem>>, vector<1x128xf32>
    %13 = vector.shape_cast %12 : vector<1x128xf32> to vector<1x1x128xf32>
    %14 = vector.broadcast %13 : vector<1x1x128xf32> to vector<2x128x128xf32>
    %15 = arith.mulf %11, %14 : vector<2x128x128xf32>
    %cst_11 = arith.constant dense<0.000000e+00> : vector<2x128xf32>
    %16 = vector.multi_reduction <add>, %15, %cst_11 [2] : vector<2x128x128xf32> to vector<2x128xf32>
    %17 = tpu.iota {dimensions = array<i32: 1>} : vector<2x128xi32>
    %c8_i32 = arith.constant 8 : i32
    %18 = vector.broadcast %c8_i32 : i32 to vector<2x128xi32>
    %19 = arith.cmpi slt, %17, %18 : vector<2x128xi32>
    %cst_12 = arith.constant -1.000000e+30 : f32
    %20 = vector.broadcast %cst_12 : f32 to vector<2x128xf32>
    %21 = arith.select %19, %16, %20 : vector<2x128xi1>, vector<2x128xf32>
    %cst_13 = arith.constant dense<0xFF800000> : vector<2xf32>
    %22 = vector.multi_reduction <maximumf>, %21, %cst_13 [1] : vector<2x128xf32> to vector<2xf32>
    %23 = vector.shape_cast %22 : vector<2xf32> to vector<2x1xf32>
    %24 = vector.broadcast %23 : vector<2x1xf32> to vector<2x128xf32>
    %25 = arith.subf %21, %24 : vector<2x128xf32>
    %26 = math.exp %25 : vector<2x128xf32>
    %cst_14 = arith.constant dense<0.000000e+00> : vector<2xf32>
    %27 = vector.multi_reduction <add>, %26, %cst_14 [1] : vector<2x128xf32> to vector<2xf32>
    %28 = vector.shape_cast %27 : vector<2xf32> to vector<2x1xf32>
    %29 = tpu.reciprocal %28 {approx = true} : vector<2x1xf32> -> vector<2x1xf32>
    %30 = vector.broadcast %29 : vector<2x1xf32> to vector<2x128xf32>
    %31 = arith.mulf %26, %30 : vector<2x128xf32>
    %c0_15 = arith.constant 0 : index
    %c0_16 = arith.constant 0 : index
    %32 = vector.load %arg3[%c0_15, %c0_16] : memref<2x128xbf16, #tpu.memory_space<vmem>>, vector<2x128xbf16>
    %33 = arith.extf %32 : vector<2x128xbf16> to vector<2x128xf32>
    %34 = arith.mulf %31, %33 : vector<2x128xf32>
    %cst_17 = arith.constant dense<0.000000e+00> : vector<2xf32>
    %35 = vector.multi_reduction <add>, %34, %cst_17 [1] : vector<2x128xf32> to vector<2xf32>
    %36 = vector.shape_cast %35 : vector<2xf32> to vector<2x1xf32>
    %cst_18 = arith.constant 1.000000e-10 : f32
    %37 = vector.broadcast %cst_18 : f32 to vector<2x1xf32>
    %38 = arith.addf %36, %37 : vector<2x1xf32>
    %39 = tpu.reciprocal %38 {approx = true} : vector<2x1xf32> -> vector<2x1xf32>
    %40 = vector.broadcast %39 : vector<2x1xf32> to vector<2x128xf32>
    %41 = arith.mulf %34, %40 : vector<2x128xf32>
    %c0_19 = arith.constant 0 : index
    %c0_20 = arith.constant 0 : index
    %42 = vector.load %arg7[%c0_19, %c0_20] : memref<2x128xf32, #tpu.memory_space<vmem>>, vector<2x128xf32>
    tpu.vector_store %arg7[%c0_19, %c0_20], %41 {strides = array<i32>} : memref<2x128xf32, #tpu.memory_space<vmem>>, vector<2x128xf32>,
    %43 = vector.shape_cast %41 : vector<2x128xf32> to vector<2x1x128xf32>
    %44 = arith.truncf %43 : vector<2x1x128xf32> to vector<2x1x128xbf16>
    "tpu.trace_start"() <{level = 10 : i32, message = "bqs,bse->bqe"}> : () -> ()
    %cst_21 = arith.constant dense<0.000000e+00> : vector<2x1x128xf32>
    %45 = tpu.matmul %44, %0, %cst_21 {dimension_numbers = #tpu.dot_dimension_numbers<[2], [1], [1], [2], [0, 0, 0, 1, 1, 2], [0], [0]>} : vector<2x1x128xbf16>, vector<2x128x128xbf16>, vector<2x1x128xf32> -> vector<2x1x128xf32>
    "tpu.trace_stop"() : () -> ()
    %c0_22 = arith.constant 0 : index
    %c0_23 = arith.constant 0 : index
    %c0_24 = arith.constant 0 : index
    %46 = vector.load %arg8[%c0_22, %c0_23, %c0_24] : memref<2x1x128xf32, #tpu.memory_space<vmem>>, vector<2x1x128xf32>
    tpu.vector_store %arg8[%c0_22, %c0_23, %c0_24], %45 {strides = array<i32>} : memref<2x1x128xf32, #tpu.memory_space<vmem>>, vector<2x1x128xf32>,
    return
  }
  func.func @transform_0(%arg0: i32) -> (i32, i32) {
    %c0_i32 = arith.constant 0 : i32
    %c0_i32_0 = arith.constant 0 : i32
    return %arg0, %c0_i32 : i32, i32
  }
  func.func @transform_1(%arg0: i32) -> (i32, i32, i32) {
    %c0_i32 = arith.constant 0 : i32
    %c0_i32_0 = arith.constant 0 : i32
    %c0_i32_1 = arith.constant 0 : i32
    return %arg0, %c0_i32, %c0_i32_0 : i32, i32, i32
  }
  func.func @transform_2(%arg0: i32) -> (i32, i32) {
    %c0_i32 = arith.constant 0 : i32
    %c0_i32_0 = arith.constant 0 : i32
    return %arg0, %c0_i32 : i32, i32
  }
  func.func @transform_3(%arg0: i32) -> (i32, i32) {
    %c0_i32 = arith.constant 0 : i32
    %c0_i32_0 = arith.constant 0 : i32
    %c0_i32_1 = arith.constant 0 : i32
    return %c0_i32, %c0_i32_0 : i32, i32
  }
  func.func @transform_4(%arg0: i32) -> (i32, i32) {
    %c0_i32 = arith.constant 0 : i32
    %c0_i32_0 = arith.constant 0 : i32
    %c0_i32_1 = arith.constant 0 : i32
    return %c0_i32, %c0_i32_0 : i32, i32
  }
  func.func @transform_5(%arg0: i32) -> (i32, i32) {
    %c0_i32 = arith.constant 0 : i32
    %c0_i32_0 = arith.constant 0 : i32
    %c0_i32_1 = arith.constant 0 : i32
    return %c0_i32, %c0_i32_0 : i32, i32
  }
  func.func @transform_6(%arg0: i32) -> (i32, i32) {
    %c0_i32 = arith.constant 0 : i32
    %c0_i32_0 = arith.constant 0 : i32
    return %arg0, %c0_i32 : i32, i32
  }
  func.func @transform_7(%arg0: i32) -> (i32, i32, i32) {
    %c0_i32 = arith.constant 0 : i32
    %c0_i32_0 = arith.constant 0 : i32
    %c0_i32_1 = arith.constant 0 : i32
    return %arg0, %c0_i32, %c0_i32_0 : i32, i32, i32
  }
}

</mosaic_0001>

<llo_original>
// kernel: attention_forward.1
$region0: #{attention_forward.1}
  #allocation0 [shape = 'u32[]', space=smem, size = 0x4, offset = 0x4, fixed_abs, tag = 'smem constant byte address 0x4 - core index']
  #allocation1 [shape = 'u32[144,128]{1,0:T(1,128)}', space=vmem, size = 0x12000, scoped, tag = 'internal scratch']
  %s0 = inlined_call_operand.vmem [shape: bf16[2,32], index: 0, kind: input, shape index: {}]
  %s1 = inlined_call_operand.vmem [shape: bf16[2,128,128], index: 1, kind: input, shape index: {}]
  %s2 = inlined_call_operand.vmem [shape: bf16[2,128], index: 2, kind: input, shape index: {}]
  %s3 = inlined_call_operand.vmem [shape: bf16[32,128], index: 3, kind: input, shape index: {}]
  %s4 = inlined_call_operand.vmem [shape: bf16[128,128], index: 4, kind: input, shape index: {}]
  %s5 = inlined_call_operand.vmem [shape: f32[1,128], index: 5, kind: input, shape index: {}]
  %s6 = inlined_call_operand.hbm [shape: f32[2,128], index: 6, kind: output, shape index: {0}]
  %s7 = inlined_call_operand.hbm [shape: f32[2,1,128], index: 7, kind: output, shape index: {1}]
  %8 = xla_tuple %s6, %s7
  %s9 = sld [smem:[#allocation0]]
  $region42: #{attention_forward.1} parent=0
    _
  %s11 = ssub.s32 1, %s9
  %s12 = scalar_select 0, %s11, %s9
  $region1: #{attention_forward.1} parent=0
    #allocation2 [shape = 'u8[1024]{0}', space=vmem, size = 0x400, scoped, tag = 'output window, operand 0, single buffered']
    #allocation3 [shape = 's32[1]{0}', space=sflag, size = 0x4, scoped, tag = 'scoped memory for attention_forward.1']
    #allocation4 [shape = 'u8[1024]{0}', space=vmem, size = 0x400, scoped, tag = 'output window, operand 1, single buffered']
    #allocation5 [shape = 's32[1]{0}', space=sflag, size = 0x4, scoped, tag = 'scoped memory for attention_forward.1']
    %13 = vsyncpa [#allocation3], 0
    %14 = vsyncpa [#allocation5], 0
    // Predicated region
    $region2: #{attention_forward.1} parent=1 // pred_check
      _
    $region3: #{attention_forward.1} parent=1 // pred_check_branch
      %16 = sbr.rel (0) target = $region5
    $region4: #{attention_forward.1} parent=1 // pred_region
      _
    $region5: #{attention_forward.1} parent=1 // pred_fallthru
      _
    // Predicated region
    $region6: #{attention_forward.1} parent=1 // pred_check
      _
    $region7: #{attention_forward.1} parent=1 // pred_check_branch
      %18 = sbr.rel (0) target = $region9
    $region8: #{attention_forward.1} parent=1 // pred_region
      _
    $region9: #{attention_forward.1} parent=1 // pred_fallthru
      _
    // Predicated region
    $region10: #{attention_forward.1} parent=1 // pred_check
      _
    $region11: #{attention_forward.1} parent=1 // pred_check_branch
      %20 = sbr.rel (0) target = $region13
    $region12: #{attention_forward.1} parent=1 // pred_region
      _
    $region13: #{attention_forward.1} parent=1 // pred_fallthru
      _
    // Predicated region
    $region14: #{attention_forward.1} parent=1 // pred_check
      _
    $region15: #{attention_forward.1} parent=1 // pred_check_branch
      %22 = sbr.rel (0) target = $region17
    $region16: #{attention_forward.1} parent=1 // pred_region
      _
    $region17: #{attention_forward.1} parent=1 // pred_fallthru
      _
    // Predicated region
    $region18: #{attention_forward.1} parent=1 // pred_check
      _
    $region19: #{attention_forward.1} parent=1 // pred_check_branch
      %24 = sbr.rel (0) target = $region21
    $region20: #{attention_forward.1} parent=1 // pred_region
      _
    $region21: #{attention_forward.1} parent=1 // pred_fallthru
      _
    // Predicated region
    $region22: #{attention_forward.1} parent=1 // pred_check
      _
    $region23: #{attention_forward.1} parent=1 // pred_check_branch
      %26 = sbr.rel (0) target = $region25
    $region24: #{attention_forward.1} parent=1 // pred_region
      _
    $region25: #{attention_forward.1} parent=1 // pred_fallthru
      _
    %v28 = vld [vmem:[%s1] sm:$0xf]
    %v29 = vld [vmem:[%s1 + $0x4] sm:$0xf]
    %v30 = vld [vmem:[%s1 + $0x8] sm:$0xf]
    %v31 = vld [vmem:[%s1 + $0xc] sm:$0xf]
    %v32 = vld [vmem:[%s1 + $0x10] sm:$0xf]
    %v33 = vld [vmem:[%s1 + $0x14] sm:$0xf]
    %v34 = vld [vmem:[%s1 + $0x18] sm:$0xf]
    %v35 = vld [vmem:[%s1 + $0x1c] sm:$0xf]
    %v36 = vld [vmem:[%s1 + $0x20] sm:$0xf]
    %v37 = vld [vmem:[%s1 + $0x24] sm:$0xf]
    %v38 = vld [vmem:[%s1 + $0x28] sm:$0xf]
    %v39 = vld [vmem:[%s1 + $0x2c] sm:$0xf]
    %v40 = vld [vmem:[%s1 + $0x30] sm:$0xf]
    %v41 = vld [vmem:[%s1 + $0x34] sm:$0xf]
    %v42 = vld [vmem:[%s1 + $0x38] sm:$0xf]
    %v43 = vld [vmem:[%s1 + $0x3c] sm:$0xf]
    %v44 = vld [vmem:[%s1 + $0x40] sm:$0xf]
    %v45 = vld [vmem:[%s1 + $0x44] sm:$0xf]
    %v46 = vld [vmem:[%s1 + $0x48] sm:$0xf]
    %v47 = vld [vmem:[%s1 + $0x4c] sm:$0xf]
    %v48 = vld [vmem:[%s1 + $0x50] sm:$0xf]
    %v49 = vld [vmem:[%s1 + $0x54] sm:$0xf]
    %v50 = vld [vmem:[%s1 + $0x58] sm:$0xf]
    %v51 = vld [vmem:[%s1 + $0x5c] sm:$0xf]
    %v52 = vld [vmem:[%s1 + $0x60] sm:$0xf]
    %v53 = vld [vmem:[%s1 + $0x64] sm:$0xf]
    %v54 = vld [vmem:[%s1 + $0x68] sm:$0xf]
    %v55 = vld [vmem:[%s1 + $0x6c] sm:$0xf]
    %v56 = vld [vmem:[%s1 + $0x70] sm:$0xf]
    %v57 = vld [vmem:[%s1 + $0x74] sm:$0xf]
    %v58 = vld [vmem:[%s1 + $0x78] sm:$0xf]
    %v59 = vld [vmem:[%s1 + $0x7c] sm:$0xf]
    %v60 = vld [vmem:[%s0] sm:$0x1]
    %v61 = vld [vmem:[%s3] sm:$0xf]
    %v62 = vld [vmem:[%s3 + $0x4] sm:$0xf]
    %v63 = vld [vmem:[%s3 + $0x8] sm:$0xf]
    %v64 = vld [vmem:[%s3 + $0xc] sm:$0xf]
    %v69 = vunpack.c.l.b16 %v61
    %v70 = vunpack.c.l.b16 %v62
    %v71 = vunpack.c.l.b16 %v63
    %v72 = vunpack.c.l.b16 %v64
    %v73 = vpack.c.b16 %v70, %v69
    %v74 = vpack.c.b16 %v72, %v71
    %vm77 = vcmask 261120
    %v79 = vsel %vm77, %v60, 0
    %81 = vmatprep.subr.bf16.mxu0 0
    %82 = vmatpush1.bf16.msra.mxu0 0
    %83 = vmatprep.subr.bf16.mxu0 0
    %84 = vmatpush1.bf16.msra.mxu0 0
    %85 = vmatprep.subr.bf16.mxu0 0
    %86 = vmatpush1.bf16.msra.mxu0 0
    %87 = vmatprep.subr.bf16.mxu0 0
    %88 = vmatpush1.bf16.msra.mxu0 0
    %89 = vmatprep.subr.bf16.mxu0 0
    %90 = vmatpush1.bf16.msra.mxu0 0
    %91 = vmatprep.subr.bf16.mxu0 0
    %92 = vmatpush1.bf16.msra.mxu0 0
    %93 = vmatprep.subr.bf16.mxu0 0
    %94 = vmatpush1.bf16.msra.mxu0 %v74
    %95 = vmatprep.subr.bf16.mxu0 0
    %96 = vmatpush1.bf16.msra.mxu0 %v73
    %97 = vmatprep.subr.bf16.mxu0 0
    %98 = vmatpush2.bf16.msra.mxu0 0
    %99 = vmatprep.subr.bf16.mxu0 0
    %100 = vmatpush2.bf16.msra.mxu0 0
    %101 = vmatprep.subr.bf16.mxu0 0
    %102 = vmatpush2.bf16.msra.mxu0 0
    %103 = vmatprep.subr.bf16.mxu0 0
    %104 = vmatpush2.bf16.msra.mxu0 0
    %105 = vmatprep.subr.bf16.mxu0 0
    %106 = vmatpush2.bf16.msra.mxu0 0
    %107 = vmatprep.subr.bf16.mxu0 0
    %108 = vmatpush2.bf16.msra.mxu0 0
    %109 = vmatprep.subr.bf16.mxu0 0
    %110 = vmatpush2.bf16.msra.mxu0 0
    %111 = vmatprep.subr.bf16.mxu0 0
    %112 = vmatpush2.bf16.msra.mxu0 0
    %113 = vmatprep.mubr.bf16.mxu0 0
    %114 = vmatmul.mubr.bf16.gmra.mxu0 %v79
    %v115 = vpop.f32.mrf.mxu0
    %v116 = vadd.f32 0.0, %v115
    %v117 = vpop.f32.mrf.mxu0
    %v118 = vpop.f32.mrf.mxu0
    %v119 = vpop.f32.mrf.mxu0
    %120 = vdwg.mxu0
    %v121 = vld [vmem:[%s4] sm:$0xf]
    %v122 = vld [vmem:[%s4 + $0x4] sm:$0xf]
    %v123 = vld [vmem:[%s4 + $0x8] sm:$0xf]
    %v124 = vld [vmem:[%s4 + $0xc] sm:$0xf]
    %v125 = vld [vmem:[%s4 + $0x10] sm:$0xf]
    %v126 = vld [vmem:[%s4 + $0x14] sm:$0xf]
    %v127 = vld [vmem:[%s4 + $0x18] sm:$0xf]
    %v128 = vld [vmem:[%s4 + $0x1c] sm:$0xf]
    %v129 = vld [vmem:[%s4 + $0x20] sm:$0xf]
    %v130 = vld [vmem:[%s4 + $0x24] sm:$0xf]
    %v131 = vld [vmem:[%s4 + $0x28] sm:$0xf]
    %v132 = vld [vmem:[%s4 + $0x2c] sm:$0xf]
    %v133 = vld [vmem:[%s4 + $0x30] sm:$0xf]
    %v134 = vld [vmem:[%s4 + $0x34] sm:$0xf]
    %v135 = vld [vmem:[%s4 + $0x38] sm:$0xf]
    %v136 = vld [vmem:[%s4 + $0x3c] sm:$0xf]
    %v169 = vunpack.c.l.b16 %v28
    %v170 = vunpack.c.l.b16 %v29
    %v171 = vunpack.c.l.b16 %v30
    %v172 = vunpack.c.l.b16 %v31
    %v173 = vunpack.c.l.b16 %v32
    %v174 = vunpack.c.l.b16 %v33
    %v175 = vunpack.c.l.b16 %v34
    %v176 = vunpack.c.l.b16 %v35
    %v177 = vunpack.c.l.b16 %v36
    %v178 = vunpack.c.l.b16 %v37
    %v179 = vunpack.c.l.b16 %v38
    %v180 = vunpack.c.l.b16 %v39
    %v181 = vunpack.c.l.b16 %v40
    %v182 = vunpack.c.l.b16 %v41
    %v183 = vunpack.c.l.b16 %v42
    %v184 = vunpack.c.l.b16 %v43
    %v185 = vunpack.c.l.b16 %v44
    %v186 = vunpack.c.l.b16 %v45
    %v187 = vunpack.c.l.b16 %v46
    %v188 = vunpack.c.l.b16 %v47
    %v189 = vunpack.c.l.b16 %v48
    %v190 = vunpack.c.l.b16 %v49
    %v191 = vunpack.c.l.b16 %v50
    %v192 = vunpack.c.l.b16 %v51
    %v193 = vunpack.c.l.b16 %v52
    %v194 = vunpack.c.l.b16 %v53
    %v195 = vunpack.c.l.b16 %v54
    %v196 = vunpack.c.l.b16 %v55
    %v197 = vunpack.c.l.b16 %v56
    %v198 = vunpack.c.l.b16 %v57
    %v199 = vunpack.c.l.b16 %v58
    %v200 = vunpack.c.l.b16 %v59
    %v201 = vpack.c.b16 %v170, %v169
    %v202 = vpack.c.b16 %v172, %v171
    %v203 = vpack.c.b16 %v174, %v173
    %v204 = vpack.c.b16 %v176, %v175
    %v205 = vpack.c.b16 %v178, %v177
    %v206 = vpack.c.b16 %v180, %v179
    %v207 = vpack.c.b16 %v182, %v181
    %v208 = vpack.c.b16 %v184, %v183
    %v209 = vpack.c.b16 %v186, %v185
    %v210 = vpack.c.b16 %v188, %v187
    %v211 = vpack.c.b16 %v190, %v189
    %v212 = vpack.c.b16 %v192, %v191
    %v213 = vpack.c.b16 %v194, %v193
    %v214 = vpack.c.b16 %v196, %v195
    %v215 = vpack.c.b16 %v198, %v197
    %v216 = vpack.c.b16 %v200, %v199
    %v249 = vunpack.c.l.b16 %v121
    %v250 = vunpack.c.l.b16 %v122
    %v251 = vunpack.c.l.b16 %v123
    %v252 = vunpack.c.l.b16 %v124
    %v253 = vunpack.c.l.b16 %v125
    %v254 = vunpack.c.l.b16 %v126
    %v255 = vunpack.c.l.b16 %v127
    %v256 = vunpack.c.l.b16 %v128
    %v257 = vunpack.c.l.b16 %v129
    %v258 = vunpack.c.l.b16 %v130
    %v259 = vunpack.c.l.b16 %v131
    %v260 = vunpack.c.l.b16 %v132
    %v261 = vunpack.c.l.b16 %v133
    %v262 = vunpack.c.l.b16 %v134
    %v263 = vunpack.c.l.b16 %v135
    %v264 = vunpack.c.l.b16 %v136
    %v265 = vpack.c.b16 %v250, %v249
    %v266 = vpack.c.b16 %v252, %v251
    %v267 = vpack.c.b16 %v254, %v253
    %v268 = vpack.c.b16 %v256, %v255
    %v269 = vpack.c.b16 %v258, %v257
    %v270 = vpack.c.b16 %v260, %v259
    %v271 = vpack.c.b16 %v262, %v261
    %v272 = vpack.c.b16 %v264, %v263
    %281 = vmatprep.subr.bf16.mxu0 0
    %282 = vmatpush1.bf16.msra.mxu0 %v272
    %283 = vmatprep.subr.bf16.mxu0 0
    %284 = vmatpush1.bf16.msra.mxu0 %v271
    %285 = vmatprep.subr.bf16.mxu0 0
    %286 = vmatpush1.bf16.msra.mxu0 %v270
    %287 = vmatprep.subr.bf16.mxu0 0
    %288 = vmatpush1.bf16.msra.mxu0 %v269
    %289 = vmatprep.subr.bf16.mxu0 0
    %290 = vmatpush1.bf16.msra.mxu0 %v268
    %291 = vmatprep.subr.bf16.mxu0 0
    %292 = vmatpush1.bf16.msra.mxu0 %v267
    %293 = vmatprep.subr.bf16.mxu0 0
    %294 = vmatpush1.bf16.msra.mxu0 %v266
    %295 = vmatprep.subr.bf16.mxu0 0
    %296 = vmatpush1.bf16.msra.mxu0 %v265
    %297 = vmatprep.subr.bf16.mxu0 0
    %298 = vmatpush2.bf16.msra.mxu0 0
    %299 = vmatprep.subr.bf16.mxu0 0
    %300 = vmatpush2.bf16.msra.mxu0 0
    %301 = vmatprep.subr.bf16.mxu0 0
    %302 = vmatpush2.bf16.msra.mxu0 0
    %303 = vmatprep.subr.bf16.mxu0 0
    %304 = vmatpush2.bf16.msra.mxu0 0
    %305 = vmatprep.subr.bf16.mxu0 0
    %306 = vmatpush2.bf16.msra.mxu0 0
    %307 = vmatprep.subr.bf16.mxu0 0
    %308 = vmatpush2.bf16.msra.mxu0 0
    %309 = vmatprep.subr.bf16.mxu0 0
    %310 = vmatpush2.bf16.msra.mxu0 0
    %311 = vmatprep.subr.bf16.mxu0 0
    %312 = vmatpush2.bf16.msra.mxu0 0
    %313 = vmatprep.mubr.bf16.mxu0 0
    %314 = vmatmul.mubr.bf16.gmra.mxu0 %v201
    %v315 = vpop.f32.mrf.mxu0
    %v316 = vadd.f32 0.0, %v315
    %v317 = vpop.f32.mrf.mxu0
    %v318 = vpop.f32.mrf.mxu0
    %v319 = vadd.f32 0.0, %v318
    %v320 = vpop.f32.mrf.mxu0
    %321 = vmatprep.mubr.bf16.mxu0 0
    %322 = vmatmul.mubr.bf16.gmra.mxu0 %v202
    %v323 = vpop.f32.mrf.mxu0
    %v324 = vadd.f32 0.0, %v323
    %v325 = vpop.f32.mrf.mxu0
    %v326 = vpop.f32.mrf.mxu0
    %v327 = vadd.f32 0.0, %v326
    %v328 = vpop.f32.mrf.mxu0
    %329 = vmatprep.mubr.bf16.mxu0 0
    %330 = vmatmul.mubr.bf16.gmra.mxu0 %v203
    %v331 = vpop.f32.mrf.mxu0
    %v332 = vadd.f32 0.0, %v331
    %v333 = vpop.f32.mrf.mxu0
    %v334 = vpop.f32.mrf.mxu0
    %v335 = vadd.f32 0.0, %v334
    %v336 = vpop.f32.mrf.mxu0
    %337 = vmatprep.mubr.bf16.mxu0 0
    %338 = vmatmul.mubr.bf16.gmra.mxu0 %v204
    %v339 = vpop.f32.mrf.mxu0
    %v340 = vadd.f32 0.0, %v339
    %v341 = vpop.f32.mrf.mxu0
    %v342 = vpop.f32.mrf.mxu0
    %v343 = vadd.f32 0.0, %v342
    %v344 = vpop.f32.mrf.mxu0
    %345 = vmatprep.mubr.bf16.mxu0 0
    %346 = vmatmul.mubr.bf16.gmra.mxu0 %v205
    %v347 = vpop.f32.mrf.mxu0
    %v348 = vadd.f32 0.0, %v347
    %v349 = vpop.f32.mrf.mxu0
    %v350 = vpop.f32.mrf.mxu0
    %v351 = vadd.f32 0.0, %v350
    %v352 = vpop.f32.mrf.mxu0
    %353 = vmatprep.mubr.bf16.mxu0 0
    %354 = vmatmul.mubr.bf16.gmra.mxu0 %v206
    %v355 = vpop.f32.mrf.mxu0
    %v356 = vadd.f32 0.0, %v355
    %v357 = vpop.f32.mrf.mxu0
    %v358 = vpop.f32.mrf.mxu0
    %v359 = vadd.f32 0.0, %v358
    %v360 = vpop.f32.mrf.mxu0
    %361 = vmatprep.mubr.bf16.mxu0 0
    %362 = vmatmul.mubr.bf16.gmra.mxu0 %v207
    %v363 = vpop.f32.mrf.mxu0
    %v364 = vadd.f32 0.0, %v363
    %v365 = vpop.f32.mrf.mxu0
    %v366 = vpop.f32.mrf.mxu0
    %v367 = vadd.f32 0.0, %v366
    %v368 = vpop.f32.mrf.mxu0
    %369 = vmatprep.mubr.bf16.mxu0 0
    %370 = vmatmul.mubr.bf16.gmra.mxu0 %v208
    %v371 = vpop.f32.mrf.mxu0
    %v372 = vadd.f32 0.0, %v371
    %v373 = vpop.f32.mrf.mxu0
    %v374 = vpop.f32.mrf.mxu0
    %v375 = vadd.f32 0.0, %v374
    %v376 = vpop.f32.mrf.mxu0
    %377 = vmatprep.mubr.bf16.mxu0 0
    %378 = vmatmul.mubr.bf16.gmra.mxu0 %v209
    %v379 = vpop.f32.mrf.mxu0
    %v380 = vadd.f32 0.0, %v379
    %v381 = vpop.f32.mrf.mxu0
    %v382 = vpop.f32.mrf.mxu0
    %v383 = vadd.f32 0.0, %v382
    %v384 = vpop.f32.mrf.mxu0
    %385 = vmatprep.mubr.bf16.mxu0 0
    %386 = vmatmul.mubr.bf16.gmra.mxu0 %v210
    %v387 = vpop.f32.mrf.mxu0
    %v388 = vadd.f32 0.0, %v387
    %v389 = vpop.f32.mrf.mxu0
    %v390 = vpop.f32.mrf.mxu0
    %v391 = vadd.f32 0.0, %v390
    %v392 = vpop.f32.mrf.mxu0
    %393 = vmatprep.mubr.bf16.mxu0 0
    %394 = vmatmul.mubr.bf16.gmra.mxu0 %v211
    %v395 = vpop.f32.mrf.mxu0
    %v396 = vadd.f32 0.0, %v395
    %v397 = vpop.f32.mrf.mxu0
    %v398 = vpop.f32.mrf.mxu0
    %v399 = vadd.f32 0.0, %v398
    %v400 = vpop.f32.mrf.mxu0
    %401 = vmatprep.mubr.bf16.mxu0 0
    %402 = vmatmul.mubr.bf16.gmra.mxu0 %v212
    %v403 = vpop.f32.mrf.mxu0
    %v404 = vadd.f32 0.0, %v403
    %v405 = vpop.f32.mrf.mxu0
    %v406 = vpop.f32.mrf.mxu0
    %v407 = vadd.f32 0.0, %v406
    %v408 = vpop.f32.mrf.mxu0
    %409 = vmatprep.mubr.bf16.mxu0 0
    %410 = vmatmul.mubr.bf16.gmra.mxu0 %v213
    %v411 = vpop.f32.mrf.mxu0
    %v412 = vadd.f32 0.0, %v411
    %v413 = vpop.f32.mrf.mxu0
    %v414 = vpop.f32.mrf.mxu0
    %v415 = vadd.f32 0.0, %v414
    %v416 = vpop.f32.mrf.mxu0
    %417 = vmatprep.mubr.bf16.mxu0 0
    %418 = vmatmul.mubr.bf16.gmra.mxu0 %v214
    %v419 = vpop.f32.mrf.mxu0
    %v420 = vadd.f32 0.0, %v419
    %v421 = vpop.f32.mrf.mxu0
    %v422 = vpop.f32.mrf.mxu0
    %v423 = vadd.f32 0.0, %v422
    %v424 = vpop.f32.mrf.mxu0
    %425 = vmatprep.mubr.bf16.mxu0 0
    %426 = vmatmul.mubr.bf16.gmra.mxu0 %v215
    %v427 = vpop.f32.mrf.mxu0
    %v428 = vadd.f32 0.0, %v427
    %v429 = vpop.f32.mrf.mxu0
    %v430 = vpop.f32.mrf.mxu0
    %v431 = vadd.f32 0.0, %v430
    %v432 = vpop.f32.mrf.mxu0
    %433 = vmatprep.mubr.bf16.mxu0 0
    %434 = vmatmul.mubr.bf16.gmra.mxu0 %v216
    %v435 = vpop.f32.mrf.mxu0
    %v436 = vadd.f32 0.0, %v435
    %v437 = vpop.f32.mrf.mxu0
    %v438 = vpop.f32.mrf.mxu0
    %v439 = vadd.f32 0.0, %v438
    %v440 = vpop.f32.mrf.mxu0
    %441 = vdwg.mxu0
    %v444 = vunpack.c.l.s4 1966171168
    %v445 = vunpack.c.0.s8 %v444
    %v446 = vlaneseq
    %v447 = vshrl.u32 %v446, 7
    %v448 = vsub.s32 %v445, %v447
    %v449 = vrot.slane %v116, %v448
    %v450 = vcombine.high %v449, %v449
    %v452 = vunpack.c.l.s4 1966171168
    %v453 = vunpack.c.0.s8 %v452
    %v454 = vlaneseq
    %v455 = vshrl.u32 %v454, 7
    %v456 = vsub.s32 %v453, %v455
    %v457 = vrot.slane %v449, %v456
    %v459 = vunpack.c.l.s4 1966171168
    %v460 = vunpack.c.0.s8 %v459
    %v461 = vlaneseq
    %v462 = vshrl.u32 %v461, 7
    %v463 = vsub.s32 %v460, %v462
    %v464 = vrot.slane %v450, %v463
    %v465 = vlaneseq
    %v466 = vshrl.u32 %v465, 7
    %v467 = vsub.s32 0, %v466
    %v468 = vrot.slane %v457, %v467
    %v469 = vlaneseq
    %v470 = vshrl.u32 %v469, 7
    %v471 = vsub.s32 0, %v470
    %v472 = vrot.slane %v464, %v471
    %v475 = vadd.f32 %v316, %v468
    %v476 = vadd.f32 %v319, %v468
    %v477 = vadd.f32 %v324, %v468
    %v478 = vadd.f32 %v327, %v468
    %v479 = vadd.f32 %v332, %v468
    %v480 = vadd.f32 %v335, %v468
    %v481 = vadd.f32 %v340, %v468
    %v482 = vadd.f32 %v343, %v468
    %v483 = vadd.f32 %v348, %v468
    %v484 = vadd.f32 %v351, %v468
    %v485 = vadd.f32 %v356, %v468
    %v486 = vadd.f32 %v359, %v468
    %v487 = vadd.f32 %v364, %v468
    %v488 = vadd.f32 %v367, %v468
    %v489 = vadd.f32 %v372, %v468
    %v490 = vadd.f32 %v375, %v468
    %v491 = vadd.f32 %v380, %v472
    %v492 = vadd.f32 %v383, %v472
    %v493 = vadd.f32 %v388, %v472
    %v494 = vadd.f32 %v391, %v472
    %v495 = vadd.f32 %v396, %v472
    %v496 = vadd.f32 %v399, %v472
    %v497 = vadd.f32 %v404, %v472
    %v498 = vadd.f32 %v407, %v472
    %v499 = vadd.f32 %v412, %v472
    %v500 = vadd.f32 %v415, %v472
    %v501 = vadd.f32 %v420, %v472
    %v502 = vadd.f32 %v423, %v472
    %v503 = vadd.f32 %v428, %v472
    %v504 = vadd.f32 %v431, %v472
    %v505 = vadd.f32 %v436, %v472
    %v506 = vadd.f32 %v439, %v472
    %v507 = vtanh.pop %v475
    %v508 = vtanh.pop %v476
    %v509 = vtanh.pop %v477
    %v510 = vtanh.pop %v478
    %v511 = vtanh.pop %v479
    %v512 = vtanh.pop %v480
    %v513 = vtanh.pop %v481
    %v514 = vtanh.pop %v482
    %v515 = vtanh.pop %v483
    %v516 = vtanh.pop %v484
    %v517 = vtanh.pop %v485
    %v518 = vtanh.pop %v486
    %v519 = vtanh.pop %v487
    %v520 = vtanh.pop %v488
    %v521 = vtanh.pop %v489
    %v522 = vtanh.pop %v490
    %v523 = vtanh.pop %v491
    %v524 = vtanh.pop %v492
    %v525 = vtanh.pop %v493
    %v526 = vtanh.pop %v494
    %v527 = vtanh.pop %v495
    %v528 = vtanh.pop %v496
    %v529 = vtanh.pop %v497
    %v530 = vtanh.pop %v498
    %v531 = vtanh.pop %v499
    %v532 = vtanh.pop %v500
    %v533 = vtanh.pop %v501
    %v534 = vtanh.pop %v502
    %v535 = vtanh.pop %v503
    %v536 = vtanh.pop %v504
    %v537 = vtanh.pop %v505
    %v538 = vtanh.pop %v506
    %v539 = vld [vmem:[%s5] sm:$0x1]
    %v541 = vlaneseq
    %v542 = vshrl.u32 %v541, 7
    %v543 = vsub.s32 0, %v542
    %v544 = vrot.slane %v539, %v543
    %v546 = vmul.f32 %v507, %v544
    %v547 = vmul.f32 %v508, %v544
    %v548 = vmul.f32 %v509, %v544
    %v549 = vmul.f32 %v510, %v544
    %v550 = vmul.f32 %v511, %v544
    %v551 = vmul.f32 %v512, %v544
    %v552 = vmul.f32 %v513, %v544
    %v553 = vmul.f32 %v514, %v544
    %v554 = vmul.f32 %v515, %v544
    %v555 = vmul.f32 %v516, %v544
    %v556 = vmul.f32 %v517, %v544
    %v557 = vmul.f32 %v518, %v544
    %v558 = vmul.f32 %v519, %v544
    %v559 = vmul.f32 %v520, %v544
    %v560 = vmul.f32 %v521, %v544
    %v561 = vmul.f32 %v522, %v544
    %v562 = vmul.f32 %v523, %v544
    %v563 = vmul.f32 %v524, %v544
    %v564 = vmul.f32 %v525, %v544
    %v565 = vmul.f32 %v526, %v544
    %v566 = vmul.f32 %v527, %v544
    %v567 = vmul.f32 %v528, %v544
    %v568 = vmul.f32 %v529, %v544
    %v569 = vmul.f32 %v530, %v544
    %v570 = vmul.f32 %v531, %v544
    %v571 = vmul.f32 %v532, %v544
    %v572 = vmul.f32 %v533, %v544
    %v573 = vmul.f32 %v534, %v544
    %v574 = vmul.f32 %v535, %v544
    %v575 = vmul.f32 %v536, %v544
    %v576 = vmul.f32 %v537, %v544
    %v577 = vmul.f32 %v538, %v544
    %578 = vadd.xlane.f32.xlu0 %v546
    %v579 = vpop.xlane.xlu0 %578
    %580 = vadd.xlane.f32.xlu0 %v547
    %v581 = vpop.xlane.xlu0 %580
    %582 = vadd.xlane.f32.xlu0 %v548
    %v583 = vpop.xlane.xlu0 %582
    %584 = vadd.xlane.f32.xlu0 %v549
    %v585 = vpop.xlane.xlu0 %584
    %586 = vadd.xlane.f32.xlu0 %v550
    %v587 = vpop.xlane.xlu0 %586
    %588 = vadd.xlane.f32.xlu0 %v551
    %v589 = vpop.xlane.xlu0 %588
    %590 = vadd.xlane.f32.xlu0 %v552
    %v591 = vpop.xlane.xlu0 %590
    %592 = vadd.xlane.f32.xlu0 %v553
    %v593 = vpop.xlane.xlu0 %592
    %594 = vadd.xlane.f32.xlu0 %v554
    %v595 = vpop.xlane.xlu0 %594
    %596 = vadd.xlane.f32.xlu0 %v555
    %v597 = vpop.xlane.xlu0 %596
    %598 = vadd.xlane.f32.xlu0 %v556
    %v599 = vpop.xlane.xlu0 %598
    %600 = vadd.xlane.f32.xlu0 %v557
    %v601 = vpop.xlane.xlu0 %600
    %602 = vadd.xlane.f32.xlu0 %v558
    %v603 = vpop.xlane.xlu0 %602
    %604 = vadd.xlane.f32.xlu0 %v559
    %v605 = vpop.xlane.xlu0 %604
    %606 = vadd.xlane.f32.xlu0 %v560
    %v607 = vpop.xlane.xlu0 %606
    %608 = vadd.xlane.f32.xlu0 %v561
    %v609 = vpop.xlane.xlu0 %608
    %610 = vadd.xlane.f32.xlu0 %v562
    %v611 = vpop.xlane.xlu0 %610
    %612 = vadd.xlane.f32.xlu0 %v563
    %v613 = vpop.xlane.xlu0 %612
    %614 = vadd.xlane.f32.xlu0 %v564
    %v615 = vpop.xlane.xlu0 %614
    %616 = vadd.xlane.f32.xlu0 %v565
    %v617 = vpop.xlane.xlu0 %616
    %618 = vadd.xlane.f32.xlu0 %v566
    %v619 = vpop.xlane.xlu0 %618
    %620 = vadd.xlane.f32.xlu0 %v567
    %v621 = vpop.xlane.xlu0 %620
    %622 = vadd.xlane.f32.xlu0 %v568
    %v623 = vpop.xlane.xlu0 %622
    %624 = vadd.xlane.f32.xlu0 %v569
    %v625 = vpop.xlane.xlu0 %624
    %626 = vadd.xlane.f32.xlu0 %v570
    %v627 = vpop.xlane.xlu0 %626
    %628 = vadd.xlane.f32.xlu0 %v571
    %v629 = vpop.xlane.xlu0 %628
    %630 = vadd.xlane.f32.xlu0 %v572
    %v631 = vpop.xlane.xlu0 %630
    %632 = vadd.xlane.f32.xlu0 %v573
    %v633 = vpop.xlane.xlu0 %632
    %634 = vadd.xlane.f32.xlu0 %v574
    %v635 = vpop.xlane.xlu0 %634
    %636 = vadd.xlane.f32.xlu0 %v575
    %v637 = vpop.xlane.xlu0 %636
    %638 = vadd.xlane.f32.xlu0 %v576
    %v639 = vpop.xlane.xlu0 %638
    %640 = vadd.xlane.f32.xlu0 %v577
    %v641 = vpop.xlane.xlu0 %640
    %v642 = vlaneseq
    %v643 = vand.u32 %v642, 127
    %vm644 = vcmp.lt.s32.totalorder %v643, 8
    %v677 = vlaneseq
    %v678 = vshrl.u32 %v677, 7
    %v679 = vsub.s32 %v643, %v678
    %v680 = vrot.slane %v579, %v679
    %v681 = vadd.s32 %v643, 4294967288
    %v682 = vlaneseq
    %v683 = vshrl.u32 %v682, 7
    %v684 = vsub.s32 %v681, %v683
    %v685 = vrot.slane %v581, %v684
    %vm686 = vcmask 130112
    %v687 = vsel %vm686, %v685, %v680
    %v688 = vadd.s32 %v643, 4294967280
    %v689 = vlaneseq
    %v690 = vshrl.u32 %v689, 7
    %v691 = vsub.s32 %v688, %v690
    %v692 = vrot.slane %v583, %v691
    %vm693 = vcmask 195712
    %v694 = vsel %vm693, %v692, %v687
    %v695 = vadd.s32 %v643, 4294967272
    %v696 = vlaneseq
    %v697 = vshrl.u32 %v696, 7
    %v698 = vsub.s32 %v695, %v697
    %v699 = vrot.slane %v585, %v698
    %vm700 = vcmask 261312
    %v701 = vsel %vm700, %v699, %v694
    %v702 = vadd.s32 %v643, 4294967264
    %v703 = vlaneseq
    %v704 = vshrl.u32 %v703, 7
    %v705 = vsub.s32 %v702, %v704
    %v706 = vrot.slane %v587, %v705
    %vm707 = vcmask 326912
    %v708 = vsel %vm707, %v706, %v701
    %v709 = vadd.s32 %v643, 4294967256
    %v710 = vlaneseq
    %v711 = vshrl.u32 %v710, 7
    %v712 = vsub.s32 %v709, %v711
    %v713 = vrot.slane %v589, %v712
    %vm714 = vcmask 392512
    %v715 = vsel %vm714, %v713, %v708
    %v716 = vadd.s32 %v643, 4294967248
    %v717 = vlaneseq
    %v718 = vshrl.u32 %v717, 7
    %v719 = vsub.s32 %v716, %v718
    %v720 = vrot.slane %v591, %v719
    %vm721 = vcmask 458112
    %v722 = vsel %vm721, %v720, %v715
    %v723 = vadd.s32 %v643, 4294967240
    %v724 = vlaneseq
    %v725 = vshrl.u32 %v724, 7
    %v726 = vsub.s32 %v723, %v725
    %v727 = vrot.slane %v593, %v726
    %vm728 = vcmask 523712
    %v729 = vsel %vm728, %v727, %v722
    %v730 = vadd.s32 %v643, 4294967232
    %v731 = vlaneseq
    %v732 = vshrl.u32 %v731, 7
    %v733 = vsub.s32 %v730, %v732
    %v734 = vrot.slane %v595, %v733
    %vm735 = vcmask 589312
    %v736 = vsel %vm735, %v734, %v729
    %v737 = vadd.s32 %v643, 4294967224
    %v738 = vlaneseq
    %v739 = vshrl.u32 %v738, 7
    %v740 = vsub.s32 %v737, %v739
    %v741 = vrot.slane %v597, %v740
    %vm742 = vcmask 654912
    %v743 = vsel %vm742, %v741, %v736
    %v744 = vadd.s32 %v643, 4294967216
    %v745 = vlaneseq
    %v746 = vshrl.u32 %v745, 7
    %v747 = vsub.s32 %v744, %v746
    %v748 = vrot.slane %v599, %v747
    %vm749 = vcmask 720512
    %v750 = vsel %vm749, %v748, %v743
    %v751 = vadd.s32 %v643, 4294967208
    %v752 = vlaneseq
    %v753 = vshrl.u32 %v752, 7
    %v754 = vsub.s32 %v751, %v753
    %v755 = vrot.slane %v601, %v754
    %vm756 = vcmask 786112
    %v757 = vsel %vm756, %v755, %v750
    %v758 = vadd.s32 %v643, 4294967200
    %v759 = vlaneseq
    %v760 = vshrl.u32 %v759, 7
    %v761 = vsub.s32 %v758, %v760
    %v762 = vrot.slane %v603, %v761
    %vm763 = vcmask 851712
    %v764 = vsel %vm763, %v762, %v757
    %v765 = vadd.s32 %v643, 4294967192
    %v766 = vlaneseq
    %v767 = vshrl.u32 %v766, 7
    %v768 = vsub.s32 %v765, %v767
    %v769 = vrot.slane %v605, %v768
    %vm770 = vcmask 917312
    %v771 = vsel %vm770, %v769, %v764
    %v772 = vadd.s32 %v643, 4294967184
    %v773 = vlaneseq
    %v774 = vshrl.u32 %v773, 7
    %v775 = vsub.s32 %v772, %v774
    %v776 = vrot.slane %v607, %v775
    %vm777 = vcmask 982912
    %v778 = vsel %vm777, %v776, %v771
    %v779 = vadd.s32 %v643, 4294967176
    %v780 = vlaneseq
    %v781 = vshrl.u32 %v780, 7
    %v782 = vsub.s32 %v779, %v781
    %v783 = vrot.slane %v609, %v782
    %vm784 = vcmask 1048512
    %v785 = vsel %vm784, %v783, %v778
    %v786 = vlaneseq
    %v787 = vshrl.u32 %v786, 7
    %v788 = vsub.s32 %v643, %v787
    %v789 = vrot.slane %v611, %v788
    %v790 = vlaneseq
    %v791 = vshrl.u32 %v790, 7
    %v792 = vsub.s32 %v681, %v791
    %v793 = vrot.slane %v613, %v792
    %v794 = vsel %vm686, %v793, %v789
    %v795 = vlaneseq
    %v796 = vshrl.u32 %v795, 7
    %v797 = vsub.s32 %v688, %v796
    %v798 = vrot.slane %v615, %v797
    %v799 = vsel %vm693, %v798, %v794
    %v800 = vlaneseq
    %v801 = vshrl.u32 %v800, 7
    %v802 = vsub.s32 %v695, %v801
    %v803 = vrot.slane %v617, %v802
    %v804 = vsel %vm700, %v803, %v799
    %v805 = vlaneseq
    %v806 = vshrl.u32 %v805, 7
    %v807 = vsub.s32 %v702, %v806
    %v808 = vrot.slane %v619, %v807
    %v809 = vsel %vm707, %v808, %v804
    %v810 = vlaneseq
    %v811 = vshrl.u32 %v810, 7
    %v812 = vsub.s32 %v709, %v811
    %v813 = vrot.slane %v621, %v812
    %v814 = vsel %vm714, %v813, %v809
    %v815 = vlaneseq
    %v816 = vshrl.u32 %v815, 7
    %v817 = vsub.s32 %v716, %v816
    %v818 = vrot.slane %v623, %v817
    %v819 = vsel %vm721, %v818, %v814
    %v820 = vlaneseq
    %v821 = vshrl.u32 %v820, 7
    %v822 = vsub.s32 %v723, %v821
    %v823 = vrot.slane %v625, %v822
    %v824 = vsel %vm728, %v823, %v819
    %v825 = vlaneseq
    %v826 = vshrl.u32 %v825, 7
    %v827 = vsub.s32 %v730, %v826
    %v828 = vrot.slane %v627, %v827
    %v829 = vsel %vm735, %v828, %v824
    %v830 = vlaneseq
    %v831 = vshrl.u32 %v830, 7
    %v832 = vsub.s32 %v737, %v831
    %v833 = vrot.slane %v629, %v832
    %v834 = vsel %vm742, %v833, %v829
    %v835 = vlaneseq
    %v836 = vshrl.u32 %v835, 7
    %v837 = vsub.s32 %v744, %v836
    %v838 = vrot.slane %v631, %v837
    %v839 = vsel %vm749, %v838, %v834
    %v840 = vlaneseq
    %v841 = vshrl.u32 %v840, 7
    %v842 = vsub.s32 %v751, %v841
    %v843 = vrot.slane %v633, %v842
    %v844 = vsel %vm756, %v843, %v839
    %v845 = vlaneseq
    %v846 = vshrl.u32 %v845, 7
    %v847 = vsub.s32 %v758, %v846
    %v848 = vrot.slane %v635, %v847
    %v849 = vsel %vm763, %v848, %v844
    %v850 = vlaneseq
    %v851 = vshrl.u32 %v850, 7
    %v852 = vsub.s32 %v765, %v851
    %v853 = vrot.slane %v637, %v852
    %v854 = vsel %vm770, %v853, %v849
    %v855 = vlaneseq
    %v856 = vshrl.u32 %v855, 7
    %v857 = vsub.s32 %v772, %v856
    %v858 = vrot.slane %v639, %v857
    %v859 = vsel %vm777, %v858, %v854
    %v860 = vlaneseq
    %v861 = vshrl.u32 %v860, 7
    %v862 = vsub.s32 %v779, %v861
    %v863 = vrot.slane %v641, %v862
    %v864 = vsel %vm784, %v863, %v859
    %vm865 = vcmask 1041409
    %v866 = vsel %vm865, %v864, %v785
    %v868 = vsel %vm644, %v866, -1e+30
    %vm869 = vcmask 1041408
    %v870 = vsel %vm869, %v868, -inf
    %871 = vmax.xlane.f32.xlu0 %v870
    %v872 = vpop.xlane.xlu0 %871
    %v873 = vsub.f32 %v868, %v872
    %v874 = vmul.f32 %v873, 1.442695
    %v875 = vpow.pop %v874
    %v876 = vsel %vm869, %v875, 0.0
    %877 = vadd.xlane.f32.xlu0 %v876
    %v878 = vpop.xlane.xlu0 %877
    %v879 = vrcp.pop %v878
    %v880 = vmul.f32 %v875, %v879
    %v881 = vld [vmem:[%s2] sm:$0x1]
    %v882 = vunpack.c.l.bf16 %v881
    %v883 = vmul.f32 %v880, %v882
    %v884 = vsel %vm869, %v883, 0.0
    %885 = vadd.xlane.f32.xlu0 %v884
    %v886 = vpop.xlane.xlu0 %885
    %v887 = vadd.f32 %v886, 1e-10
    %v888 = vrcp.pop %v887
    %v889 = vmul.f32 %v883, %v888
    %890 = vst [vmem:[#allocation2] sm:$0x3] %v889
    %v893 = vunpack.c.l.s4 1966171168
    %v894 = vunpack.c.0.s8 %v893
    %v895 = vlaneseq
    %v896 = vshrl.u32 %v895, 7
    %v897 = vsub.s32 %v894, %v896
    %v898 = vrot.slane %v889, %v897
    %v899 = vcombine.high %v898, %v898
    %v901 = vunpack.c.l.s4 1966171168
    %v902 = vunpack.c.0.s8 %v901
    %v903 = vlaneseq
    %v904 = vshrl.u32 %v903, 7
    %v905 = vsub.s32 %v902, %v904
    %v906 = vrot.slane %v898, %v905
    %v908 = vunpack.c.l.s4 1966171168
    %v909 = vunpack.c.0.s8 %v908
    %v910 = vlaneseq
    %v911 = vshrl.u32 %v910, 7
    %v912 = vsub.s32 %v909, %v911
    %v913 = vrot.slane %v899, %v912
    %v916 = vpack.c.bf16 %v906, %v906
    %v917 = vpack.c.bf16 %v913, %v913
    %918 = vmatprep.subr.bf16.mxu0 0
    %919 = vmatpush1.bf16.msra.mxu0 %v208
    %920 = vmatprep.subr.bf16.mxu0 0
    %921 = vmatpush1.bf16.msra.mxu0 %v207
    %922 = vmatprep.subr.bf16.mxu0 0
    %923 = vmatpush1.bf16.msra.mxu0 %v206
    %924 = vmatprep.subr.bf16.mxu0 0
    %925 = vmatpush1.bf16.msra.mxu0 %v205
    %926 = vmatprep.subr.bf16.mxu0 0
    %927 = vmatpush1.bf16.msra.mxu0 %v204
    %928 = vmatprep.subr.bf16.mxu0 0
    %929 = vmatpush1.bf16.msra.mxu0 %v203
    %930 = vmatprep.subr.bf16.mxu0 0
    %931 = vmatpush1.bf16.msra.mxu0 %v202
    %932 = vmatprep.subr.bf16.mxu0 0
    %933 = vmatpush1.bf16.msra.mxu0 %v201
    %934 = vmatprep.subr.bf16.mxu0 0
    %935 = vmatpush2.bf16.msra.mxu0 0
    %936 = vmatprep.subr.bf16.mxu0 0
    %937 = vmatpush2.bf16.msra.mxu0 0
    %938 = vmatprep.subr.bf16.mxu0 0
    %939 = vmatpush2.bf16.msra.mxu0 0
    %940 = vmatprep.subr.bf16.mxu0 0
    %941 = vmatpush2.bf16.msra.mxu0 0
    %942 = vmatprep.subr.bf16.mxu0 0
    %943 = vmatpush2.bf16.msra.mxu0 0
    %944 = vmatprep.subr.bf16.mxu0 0
    %945 = vmatpush2.bf16.msra.mxu0 0
    %946 = vmatprep.subr.bf16.mxu0 0
    %947 = vmatpush2.bf16.msra.mxu0 0
    %948 = vmatprep.subr.bf16.mxu0 0
    %949 = vmatpush2.bf16.msra.mxu0 0
    %950 = vmatprep.mubr.bf16.mxu0 0
    %951 = vmatmul.mubr.bf16.gmra.mxu0 %v916
    %v952 = vpop.f32.mrf.mxu0
    %v953 = vadd.f32 0.0, %v952
    %v954 = vpop.f32.mrf.mxu0
    %v955 = vpop.f32.mrf.mxu0
    %v956 = vpop.f32.mrf.mxu0
    %957 = vdwg.mxu0
    %958 = vmatprep.subr.bf16.mxu0 0
    %959 = vmatpush1.bf16.msra.mxu0 %v216
    %960 = vmatprep.subr.bf16.mxu0 0
    %961 = vmatpush1.bf16.msra.mxu0 %v215
    %962 = vmatprep.subr.bf16.mxu0 0
    %963 = vmatpush1.bf16.msra.mxu0 %v214
    %964 = vmatprep.subr.bf16.mxu0 0
    %965 = vmatpush1.bf16.msra.mxu0 %v213
    %966 = vmatprep.subr.bf16.mxu0 0
    %967 = vmatpush1.bf16.msra.mxu0 %v212
    %968 = vmatprep.subr.bf16.mxu0 0
    %969 = vmatpush1.bf16.msra.mxu0 %v211
    %970 = vmatprep.subr.bf16.mxu0 0
    %971 = vmatpush1.bf16.msra.mxu0 %v210
    %972 = vmatprep.subr.bf16.mxu0 0
    %973 = vmatpush1.bf16.msra.mxu0 %v209
    %974 = vmatprep.subr.bf16.mxu0 0
    %975 = vmatpush2.bf16.msra.mxu0 0
    %976 = vmatprep.subr.bf16.mxu0 0
    %977 = vmatpush2.bf16.msra.mxu0 0
    %978 = vmatprep.subr.bf16.mxu0 0
    %979 = vmatpush2.bf16.msra.mxu0 0
    %980 = vmatprep.subr.bf16.mxu0 0
    %981 = vmatpush2.bf16.msra.mxu0 0
    %982 = vmatprep.subr.bf16.mxu0 0
    %983 = vmatpush2.bf16.msra.mxu0 0
    %984 = vmatprep.subr.bf16.mxu0 0
    %985 = vmatpush2.bf16.msra.mxu0 0
    %986 = vmatprep.subr.bf16.mxu0 0
    %987 = vmatpush2.bf16.msra.mxu0 0
    %988 = vmatprep.subr.bf16.mxu0 0
    %989 = vmatpush2.bf16.msra.mxu0 0
    %990 = vmatprep.mubr.bf16.mxu0 0
    %991 = vmatmul.mubr.bf16.gmra.mxu0 %v917
    %v992 = vpop.f32.mrf.mxu0
    %v993 = vadd.f32 0.0, %v992
    %v994 = vpop.f32.mrf.mxu0
    %v995 = vpop.f32.mrf.mxu0
    %v996 = vpop.f32.mrf.mxu0
    %997 = vdwg.mxu0
    %998 = vst [vmem:[#allocation4] sm:$0x1] %v953
    %999 = vst [vmem:[#allocation4 + $0x1] sm:$0x1] %v993
    // Predicated region
    $region26: #{attention_forward.1} parent=1 // pred_check
      _
    $region27: #{attention_forward.1} parent=1 // pred_check_branch
      %1001 = sbr.rel (0) target = $region29
    $region28: #{attention_forward.1} parent=1 // pred_region
      %s1003 = ssub.s32 32, 32
      %1004 = vsyncadd [#allocation3], %s1003
      %s1006 = sshll.u32 [#allocation2], 4
      %s1007 = int_to_ptr.vmem [resolvable:$true] %s1006
      %1009 = dma.vmem_to_hbm [thread:$0]  %s1007, 32, %s6, [#allocation3]
    $region29: #{attention_forward.1} parent=1 // pred_fallthru
      _
    // Predicated region
    $region30: #{attention_forward.1} parent=1 // pred_check
      _
    $region31: #{attention_forward.1} parent=1 // pred_check_branch
      %1011 = sbr.rel (0) target = $region33
    $region32: #{attention_forward.1} parent=1 // pred_region
      %s1013 = ssub.s32 32, 32
      %1014 = vsyncadd [#allocation5], %s1013
      %s1015 = sshll.u32 [#allocation4], 4
      %s1016 = int_to_ptr.vmem [resolvable:$true] %s1015
      %1021 = dma.vmem_to_hbm [thread:$0]  %s1016, 32, %s7, [#allocation5], 16, 16, 1
    $region33: #{attention_forward.1} parent=1 // pred_fallthru
      _
    // Predicated region
    $region34: #{attention_forward.1} parent=1 // pred_check
      _
    $region35: #{attention_forward.1} parent=1 // pred_check_branch
      %1023 = sbr.rel (0) target = $region37
    $region36: #{attention_forward.1} parent=1 // pred_region
      %1024 = dma.done [#allocation3], 32
    $region37: #{attention_forward.1} parent=1 // pred_fallthru
      _
    // Predicated region
    $region38: #{attention_forward.1} parent=1 // pred_check
      _
    $region39: #{attention_forward.1} parent=1 // pred_check_branch
      %1026 = sbr.rel (0) target = $region41
    $region40: #{attention_forward.1} parent=1 // pred_region
      %1027 = dma.done [#allocation5], 32
    $region41: #{attention_forward.1} parent=1 // pred_fallthru
      _
    %1028 = vsyncpa [#allocation3], 1
    %1029 = vsyncpa [#allocation5], 1

</llo_original>
